<compile_context>
chip_gen: v5e
topology: v5e:2x2
jax: 0.10.0
libtpu: 0.0.40
codegen_flags: <defaults>
</compile_context>

<pallas_src>
import functools

import jax
import jax.numpy as jnp
from jax.experimental import pallas as pl
from jax.experimental.pallas import tpu as pltpu


def qnet_kernel(x_ref, w1_ref, b1_ref, w2_ref, b2_ref, w3_ref, b3_ref, o_ref):
    x = x_ref[...]                    # (tb, S) float32
    S = x.shape[1]

    # ---- Layer 1 on the VPU: K=S is tiny, unrolled outer-product accumulate.
    h1 = b1_ref[...]                  # (1, H) f32, broadcasts against (tb, H)
    for k in range(S):                # S is static; fully unrolled
        h1 = h1 + x[:, k:k + 1] * w1_ref[k:k + 1, :]
    h1 = jnp.maximum(h1, 0.0)

    # ---- Layer 2: 128x128 MXU matmul, f32 accumulation, fused bias + ReLU.
    h2 = jnp.dot(h1.astype(w2_ref.dtype), w2_ref[...],
                 preferred_element_type=jnp.float32) + b2_ref[...]
    h2 = jnp.maximum(h2, 0.0)

    # ---- Layer 3: 128xA MXU matmul (A small; masked store is hidden under
    # the matmuls), fused bias.
    out = jnp.dot(h2.astype(w3_ref.dtype), w3_ref[...],
                  preferred_element_type=jnp.float32) + b3_ref[...]
    o_ref[...] = out.astype(o_ref.dtype)


def _choose_tile(B, tile_b, split_threshold=512):
    """Pick (tb, B_pad): tb is the full batch (single block) or a multiple of 8
    that divides B_pad. Prefers no padding; guarantees >=2 grid steps for
    medium/large batches so v7x's second TensorCore participates."""
    if B <= split_threshold:
        return B, B                                    # single block, no pad
    if B <= tile_b:
        tb = ((B + 1) // 2 + 7) // 8 * 8               # round_up(ceil(B/2), 8)
        return tb, 2 * tb                              # 2 grid steps
    # B > tile_b: prefer a tile (multiple of 8) that divides B exactly.
    for tb in range(tile_b, 7, -8):
        if B % tb == 0:
            return tb, B
    tb = tile_b
    return tb, ((B + tb - 1) // tb) * tb


@functools.partial(jax.jit, static_argnames=("tile_b", "compute_dtype"))
def qnetwork_forward(x, params, tile_b=1024, compute_dtype=None):
    """Forward pass of QNetwork.

    x: [B, state_dim] float32
    params: dict with w1 [S,128], b1 [1,128], w2 [128,128], b2 [1,128],
            w3 [128,A], b3 [1,A]   (weights stored [in, out] so kernel does x @ W)
    compute_dtype: optional (e.g. jnp.bfloat16) dtype for w2/w3 (MXU inputs);
                   accumulation stays f32, x / w1 / biases stay f32.
    returns: [B, action_dim] float32
    """
    w1, b1, w2, b2, w3, b3 = (params[k] for k in ("w1", "b1", "w2", "b2", "w3", "b3"))
    B, S = x.shape
    H = w1.shape[1]
    A = w3.shape[1]

    if compute_dtype is not None:
        w2 = w2.astype(compute_dtype)
        w3 = w3.astype(compute_dtype)

    tb, B_pad = _choose_tile(B, max(8, (tile_b // 8) * 8))
    if B_pad != B:
        x = jnp.pad(x, ((0, B_pad - B), (0, 0)))
    grid = (B_pad // tb,)

    # Whole-array VMEM residents: constants are not double-buffered/pipelined.
    resident = pl.BlockSpec(memory_space=pltpu.MemorySpace.VMEM)

    weight_bytes = sum(a.size * a.dtype.itemsize for a in (w1, b1, w2, b2, w3, b3))
    cost = pl.CostEstimate(
        flops=2 * B_pad * (S * H + H * H + H * A),
        transcendentals=0,
        bytes_accessed=B_pad * S * 4 + B_pad * A * 4 + weight_bytes,
    )

    out = pl.pallas_call(
        qnet_kernel,
        out_shape=jax.ShapeDtypeStruct((B_pad, A), jnp.float32),
        grid_spec=pltpu.PrefetchScalarGridSpec(
            num_scalar_prefetch=0,
            grid=grid,
            in_specs=[
                pl.BlockSpec((tb, S), lambda i: (i, 0)),   # x tile (pipelined)
                resident,  # w1
                resident,  # b1
                resident,  # w2
                resident,  # b2
                resident,  # w3
                resident,  # b3
            ],
            out_specs=pl.BlockSpec((tb, A), lambda i: (i, 0)),
        ),
        compiler_params=pltpu.CompilerParams(
            dimension_semantics=("parallel",),
            vmem_limit_bytes=32 * 1024 * 1024,  # covers v5e's 16 MiB default scope
        ),
        cost_estimate=cost,
    )(x, w1, b1, w2, b2, w3, b3)

    if B_pad != B:
        out = out[:B]
    return out


def init_params(key, state_dim, action_dim, hidden=128):
    """Deterministic init mimicking PyTorch's default Linear init
    (U(-1/sqrt(fan_in), 1/sqrt(fan_in)) for both weight and bias)."""
    def linear(key, fan_in, fan_out):
        kw, kb = jax.random.split(key)
        bound = 1.0 / jnp.sqrt(fan_in)
        # stored as [in, out] so the kernel computes x @ W
        w = jax.random.uniform(kw, (fan_in, fan_out), jnp.float32, -bound, bound)
        b = jax.random.uniform(kb, (1, fan_out), jnp.float32, -bound, bound)
        return w, b

    k1, k2, k3 = jax.random.split(key, 3)
    w1, b1 = linear(k1, state_dim, hidden)
    w2, b2 = linear(k2, hidden, hidden)
    w3, b3 = linear(k3, hidden, action_dim)
    return {"w1": w1, "b1": b1, "w2": w2, "b2": b2, "w3": w3, "b3": b3}


def reference_forward(x, p):
    dot = functools.partial(jnp.dot, precision=jax.lax.Precision.HIGHEST)
    h1 = jnp.maximum(dot(x, p["w1"]) + p["b1"], 0.0)
    h2 = jnp.maximum(dot(h1, p["w2"]) + p["b2"], 0.0)
    return dot(h2, p["w3"]) + p["b3"]


if __name__ == "__main__":
    key = jax.random.PRNGKey(0)
    k_param, k_x = jax.random.split(key)

    state_dim, action_dim, batch = 4, 2, 2
    params = init_params(k_param, state_dim, action_dim)
    x = jax.random.normal(k_x, (batch, state_dim), jnp.float32)
    ref = reference_forward(x, params)

    # f32 path, tiny batch: single full-batch block, unpadded (2, 2) output.
    out = jax.block_until_ready(qnetwork_forward(x, params))
    assert out.shape == (batch, action_dim)
    assert jnp.allclose(out, ref, atol=1e-4, rtol=1e-4)

    # bf16 MXU weights with f32 accumulation (loose tolerance vs f32 ref).
    out_bf16 = jax.block_until_ready(
        qnetwork_forward(x, params, compute_dtype=jnp.bfloat16))
    assert out_bf16.shape == (batch, action_dim)
    assert jnp.allclose(out_bf16, ref, atol=3e-2, rtol=3e-2)

    # Medium batch: split into 2 grid steps (v7x dual-TC path), with row padding.
    xm = jax.random.normal(jax.random.PRNGKey(1), (600, state_dim), jnp.float32)
    out_m = jax.block_until_ready(qnetwork_forward(xm, params))
    assert out_m.shape == (600, action_dim)
    assert jnp.allclose(out_m, reference_forward(xm, params), atol=1e-3, rtol=1e-3)

    # Large batch: tiled path, tile divides B exactly (no pad), grid of 2 steps.
    xb = jax.random.normal(jax.random.PRNGKey(2), (2048, state_dim), jnp.float32)
    out_b = jax.block_until_ready(qnetwork_forward(xb, params))
    assert out_b.shape == (2048, action_dim)
    assert jnp.allclose(out_b, reference_forward(xb, params), atol=1e-3, rtol=1e-3)

    print("KERNEL_OK")
</pallas_src>

<mosaic_0001>
module attributes {stable_mosaic.version = 11 : i64} {
  func.func @qnet_kernel(%arg0: i32, %arg1: memref<2x4xf32, #tpu.memory_space<vmem>>, %arg2: memref<4x128xf32, #tpu.memory_space<vmem>>, %arg3: memref<1x128xf32, #tpu.memory_space<vmem>>, %arg4: memref<128x128xf32, #tpu.memory_space<vmem>>, %arg5: memref<1x128xf32, #tpu.memory_space<vmem>>, %arg6: memref<128x2xf32, #tpu.memory_space<vmem>>, %arg7: memref<1x2xf32, #tpu.memory_space<vmem>>, %arg8: memref<2x2xf32, #tpu.memory_space<vmem>>) attributes {dimension_semantics = [#tpu.dimension_semantics<parallel>], iteration_bounds = array<i64: 1>, scalar_prefetch = 0 : i64, scratch_operands = 0 : i64, tpu.core_type = #tpu.core_type<tc>, window_params = [{transform_indices = @transform_0, window_bounds = array<i64: 2, 4>}, {pipeline_mode = #tpu.pipeline_mode<synchronous>, transform_indices = @transform_1, window_bounds = array<i64: 4, 128>}, {pipeline_mode = #tpu.pipeline_mode<synchronous>, transform_indices = @transform_2, window_bounds = array<i64: 1, 128>}, {pipeline_mode = #tpu.pipeline_mode<synchronous>, transform_indices = @transform_3, window_bounds = array<i64: 128, 128>}, {pipeline_mode = #tpu.pipeline_mode<synchronous>, transform_indices = @transform_4, window_bounds = array<i64: 1, 128>}, {pipeline_mode = #tpu.pipeline_mode<synchronous>, transform_indices = @transform_5, window_bounds = array<i64: 128, 2>}, {pipeline_mode = #tpu.pipeline_mode<synchronous>, transform_indices = @transform_6, window_bounds = array<i64: 1, 2>}, {transform_indices = @transform_7, window_bounds = array<i64: 2, 2>}]} {
    %c0 = arith.constant 0 : index
    %c0_0 = arith.constant 0 : index
    %0 = vector.load %arg1[%c0, %c0_0] : memref<2x4xf32, #tpu.memory_space<vmem>>, vector<2x4xf32>
    %c0_1 = arith.constant 0 : index
    %c0_2 = arith.constant 0 : index
    %1 = vector.load %arg3[%c0_1, %c0_2] : memref<1x128xf32, #tpu.memory_space<vmem>>, vector<1x128xf32>
    %2 = vector.extract_strided_slice %0 {offsets = [0, 0], sizes = [2, 1], strides = [1, 1]} : vector<2x4xf32> to vector<2x1xf32>
    %c0_3 = arith.constant 0 : index
    %c0_4 = arith.constant 0 : index
    %3 = vector.load %arg2[%c0_3, %c0_4] : memref<4x128xf32, #tpu.memory_space<vmem>>, vector<1x128xf32>
    %4 = vector.broadcast %2 : vector<2x1xf32> to vector<2x128xf32>
    %5 = vector.broadcast %3 : vector<1x128xf32> to vector<2x128xf32>
    %6 = arith.mulf %4, %5 : vector<2x128xf32>
    %7 = vector.broadcast %1 : vector<1x128xf32> to vector<2x128xf32>
    %8 = arith.addf %7, %6 : vector<2x128xf32>
    %9 = vector.extract_strided_slice %0 {offsets = [0, 1], sizes = [2, 1], strides = [1, 1]} : vector<2x4xf32> to vector<2x1xf32>
    %c1 = arith.constant 1 : index
    %c0_5 = arith.constant 0 : index
    %10 = vector.load %arg2[%c1, %c0_5] : memref<4x128xf32, #tpu.memory_space<vmem>>, vector<1x128xf32>
    %11 = vector.broadcast %9 : vector<2x1xf32> to vector<2x128xf32>
    %12 = vector.broadcast %10 : vector<1x128xf32> to vector<2x128xf32>
    %13 = arith.mulf %11, %12 : vector<2x128xf32>
    %14 = arith.addf %8, %13 : vector<2x128xf32>
    %15 = vector.extract_strided_slice %0 {offsets = [0, 2], sizes = [2, 1], strides = [1, 1]} : vector<2x4xf32> to vector<2x1xf32>
    %c2 = arith.constant 2 : index
    %c0_6 = arith.constant 0 : index
    %16 = vector.load %arg2[%c2, %c0_6] : memref<4x128xf32, #tpu.memory_space<vmem>>, vector<1x128xf32>
    %17 = vector.broadcast %15 : vector<2x1xf32> to vector<2x128xf32>
    %18 = vector.broadcast %16 : vector<1x128xf32> to vector<2x128xf32>
    %19 = arith.mulf %17, %18 : vector<2x128xf32>
    %20 = arith.addf %14, %19 : vector<2x128xf32>
    %21 = vector.extract_strided_slice %0 {offsets = [0, 3], sizes = [2, 1], strides = [1, 1]} : vector<2x4xf32> to vector<2x1xf32>
    %c3 = arith.constant 3 : index
    %c0_7 = arith.constant 0 : index
    %22 = vector.load %arg2[%c3, %c0_7] : memref<4x128xf32, #tpu.memory_space<vmem>>, vector<1x128xf32>
    %23 = vector.broadcast %21 : vector<2x1xf32> to vector<2x128xf32>
    %24 = vector.broadcast %22 : vector<1x128xf32> to vector<2x128xf32>
    %25 = arith.mulf %23, %24 : vector<2x128xf32>
    %26 = arith.addf %20, %25 : vector<2x128xf32>
    %cst = arith.constant 0.000000e+00 : f32
    %27 = vector.broadcast %cst : f32 to vector<2x128xf32>
    %28 = arith.maximumf %26, %27 : vector<2x128xf32>
    %c0_8 = arith.constant 0 : index
    %c0_9 = arith.constant 0 : index
    %29 = vector.load %arg4[%c0_8, %c0_9] : memref<128x128xf32, #tpu.memory_space<vmem>>, vector<128x128xf32>
    %cst_10 = arith.constant dense<0.000000e+00> : vector<2x128xf32>
    %30 = tpu.matmul %28, %29, %cst_10 {dimension_numbers = #tpu.dot_dimension_numbers<[1], [0], [0], [1], [0, 0, 1, 1], [], []>} : vector<2x128xf32>, vector<128x128xf32>, vector<2x128xf32> -> vector<2x128xf32>
    %c0_11 = arith.constant 0 : index
    %c0_12 = arith.constant 0 : index
    %31 = vector.load %arg5[%c0_11, %c0_12] : memref<1x128xf32, #tpu.memory_space<vmem>>, vector<1x128xf32>
    %32 = vector.broadcast %31 : vector<1x128xf32> to vector<2x128xf32>
    %33 = arith.addf %30, %32 : vector<2x128xf32>
    %cst_13 = arith.constant 0.000000e+00 : f32
    %34 = vector.broadcast %cst_13 : f32 to vector<2x128xf32>
    %35 = arith.maximumf %33, %34 : vector<2x128xf32>
    %c0_14 = arith.constant 0 : index
    %c0_15 = arith.constant 0 : index
    %36 = vector.load %arg6[%c0_14, %c0_15] : memref<128x2xf32, #tpu.memory_space<vmem>>, vector<128x2xf32>
    %cst_16 = arith.constant dense<0.000000e+00> : vector<2x2xf32>
    %37 = tpu.matmul %35, %36, %cst_16 {dimension_numbers = #tpu.dot_dimension_numbers<[1], [0], [0], [1], [0, 0, 1, 1], [], []>} : vector<2x128xf32>, vector<128x2xf32>, vector<2x2xf32> -> vector<2x2xf32>
    %c0_17 = arith.constant 0 : index
    %c0_18 = arith.constant 0 : index
    %38 = vector.load %arg7[%c0_17, %c0_18] : memref<1x2xf32, #tpu.memory_space<vmem>>, vector<1x2xf32>
    %39 = vector.broadcast %38 : vector<1x2xf32> to vector<2x2xf32>
    %40 = arith.addf %37, %39 : vector<2x2xf32>
    %c0_19 = arith.constant 0 : index
    %c0_20 = arith.constant 0 : index
    %41 = vector.load %arg8[%c0_19, %c0_20] : memref<2x2xf32, #tpu.memory_space<vmem>>, vector<2x2xf32>
    tpu.vector_store %arg8[%c0_19, %c0_20], %40 {strides = array<i32>} : memref<2x2xf32, #tpu.memory_space<vmem>>, vector<2x2xf32>,
    return
  }
  func.func @transform_0(%arg0: i32) -> (i32, i32) {
    %c0_i32 = arith.constant 0 : i32
    %c0_i32_0 = arith.constant 0 : i32
    return %arg0, %c0_i32 : i32, i32
  }
  func.func @transform_1(%arg0: i32) -> (i32, i32) {
    %c0_i32 = arith.constant 0 : i32
    %c0_i32_0 = arith.constant 0 : i32
    %c0_i32_1 = arith.constant 0 : i32
    return %c0_i32, %c0_i32_0 : i32, i32
  }
  func.func @transform_2(%arg0: i32) -> (i32, i32) {
    %c0_i32 = arith.constant 0 : i32
    %c0_i32_0 = arith.constant 0 : i32
    %c0_i32_1 = arith.constant 0 : i32
    return %c0_i32, %c0_i32_0 : i32, i32
  }
  func.func @transform_3(%arg0: i32) -> (i32, i32) {
    %c0_i32 = arith.constant 0 : i32
    %c0_i32_0 = arith.constant 0 : i32
    %c0_i32_1 = arith.constant 0 : i32
    return %c0_i32, %c0_i32_0 : i32, i32
  }
  func.func @transform_4(%arg0: i32) -> (i32, i32) {
    %c0_i32 = arith.constant 0 : i32
    %c0_i32_0 = arith.constant 0 : i32
    %c0_i32_1 = arith.constant 0 : i32
    return %c0_i32, %c0_i32_0 : i32, i32
  }
  func.func @transform_5(%arg0: i32) -> (i32, i32) {
    %c0_i32 = arith.constant 0 : i32
    %c0_i32_0 = arith.constant 0 : i32
    %c0_i32_1 = arith.constant 0 : i32
    return %c0_i32, %c0_i32_0 : i32, i32
  }
  func.func @transform_6(%arg0: i32) -> (i32, i32) {
    %c0_i32 = arith.constant 0 : i32
    %c0_i32_0 = arith.constant 0 : i32
    %c0_i32_1 = arith.constant 0 : i32
    return %c0_i32, %c0_i32_0 : i32, i32
  }
  func.func @transform_7(%arg0: i32) -> (i32, i32) {
    %c0_i32 = arith.constant 0 : i32
    %c0_i32_0 = arith.constant 0 : i32
    return %arg0, %c0_i32 : i32, i32
  }
}

</mosaic_0001>

<llo_original>
// kernel: qnetwork_forward.1
$region0: #{qnetwork_forward.1}
  #allocation0 [shape = 'u32[]', space=smem, size = 0x4, offset = 0x4, fixed_abs, tag = 'smem constant byte address 0x4 - core index']
  #allocation1 [shape = 'u32[72,128]{1,0:T(1,128)}', space=vmem, size = 0x9000, scoped, tag = 'internal scratch']
  %s0 = inlined_call_operand.hbm [shape: f32[2,4], index: 0, kind: input, shape index: {}]
  %s1 = inlined_call_operand.vmem [shape: f32[4,128], index: 1, kind: input, shape index: {}]
  %s2 = inlined_call_operand.vmem [shape: f32[1,128], index: 2, kind: input, shape index: {}]
  %s3 = inlined_call_operand.vmem [shape: f32[128,128], index: 3, kind: input, shape index: {}]
  %s4 = inlined_call_operand.hbm [shape: f32[1,128], index: 4, kind: input, shape index: {}]
  %s5 = inlined_call_operand.vmem [shape: f32[128,2], index: 5, kind: input, shape index: {}]
  %s6 = inlined_call_operand.hbm [shape: f32[1,2], index: 6, kind: input, shape index: {}]
  %s7 = inlined_call_operand.hbm [shape: f32[2,2], index: 7, kind: output, shape index: {}]
  %s8 = sld [smem:[#allocation0]]
  $region50: #{qnetwork_forward.1} parent=0
    _
  %s10 = ssub.s32 1, %s8
  %s11 = scalar_select 0, %s10, %s8
  $region1: #{qnetwork_forward.1} parent=0
    #allocation2 [shape = 'u8[1024]{0}', space=vmem, size = 0x400, scoped, tag = 'input window, operand 0, single buffered']
    #allocation3 [shape = 's32[1]{0}', space=sflag, size = 0x4, scoped, tag = 'scoped memory for qnetwork_forward.1']
    #allocation4 [shape = 's32[1]{0}', space=sflag, size = 0x4, scoped, tag = 'scoped memory for qnetwork_forward.1']
    #allocation5 [shape = 'u8[512]{0}', space=vmem, size = 0x400, scoped, tag = 'input window, operand 4, single buffered']
    #allocation6 [shape = 's32[1]{0}', space=sflag, size = 0x4, scoped, tag = 'scoped memory for qnetwork_forward.1']
    #allocation7 [shape = 'u8[512]{0}', space=vmem, size = 0x400, scoped, tag = 'input window, operand 6, single buffered']
    #allocation8 [shape = 'u8[1024]{0}', space=vmem, size = 0x400, scoped, tag = 'output window, operand 0, single buffered']
    %12 = vsyncpa [#allocation3], 0
    %13 = vsyncpa [#allocation6], 0
    %14 = vsyncpa [#allocation4], 0
    // Predicated region
    $region2: #{qnetwork_forward.1} parent=1 // pred_check
      _
    $region3: #{qnetwork_forward.1} parent=1 // pred_check_branch
      %16 = sbr.rel (0) target = $region5
    $region4: #{qnetwork_forward.1} parent=1 // pred_region
      %18 = vsyncadd [#allocation3], 0
      %s20 = sshll.u32 %s0, 4
      %s21 = int_to_ptr.hbm [resolvable:$true] %s20
      %s22 = sshll.u32 [#allocation2], 4
      %s23 = int_to_ptr.vmem [resolvable:$true] %s22
      %25 = dma.hbm_to_vmem [thread:$0]  %s21, 32, %s23, [#allocation3]
    $region5: #{qnetwork_forward.1} parent=1 // pred_fallthru
      _
    // Predicated region
    $region6: #{qnetwork_forward.1} parent=1 // pred_check
      _
    $region7: #{qnetwork_forward.1} parent=1 // pred_check_branch
      %27 = sbr.rel (0) target = $region9
    $region8: #{qnetwork_forward.1} parent=1 // pred_region
      _
    $region9: #{qnetwork_forward.1} parent=1 // pred_fallthru
      _
    // Predicated region
    $region10: #{qnetwork_forward.1} parent=1 // pred_check
      _
    $region11: #{qnetwork_forward.1} parent=1 // pred_check_branch
      %29 = sbr.rel (0) target = $region13
    $region12: #{qnetwork_forward.1} parent=1 // pred_region
      _
    $region13: #{qnetwork_forward.1} parent=1 // pred_fallthru
      _
    // Predicated region
    $region14: #{qnetwork_forward.1} parent=1 // pred_check
      _
    $region15: #{qnetwork_forward.1} parent=1 // pred_check_branch
      %31 = sbr.rel (0) target = $region17
    $region16: #{qnetwork_forward.1} parent=1 // pred_region
      _
    $region17: #{qnetwork_forward.1} parent=1 // pred_fallthru
      _
    // Predicated region
    $region18: #{qnetwork_forward.1} parent=1 // pred_check
      _
    $region19: #{qnetwork_forward.1} parent=1 // pred_check_branch
      %33 = sbr.rel (0) target = $region21
    $region20: #{qnetwork_forward.1} parent=1 // pred_region
      %35 = vsyncadd [#allocation6], 0
      %s37 = sshll.u32 %s4, 4
      %s38 = int_to_ptr.hbm [resolvable:$true] %s37
      %s39 = sshll.u32 [#allocation5], 4
      %s40 = int_to_ptr.vmem [resolvable:$true] %s39
      %42 = dma.hbm_to_vmem [thread:$0]  %s38, 16, %s40, [#allocation6]
    $region21: #{qnetwork_forward.1} parent=1 // pred_fallthru
      _
    // Predicated region
    $region22: #{qnetwork_forward.1} parent=1 // pred_check
      _
    $region23: #{qnetwork_forward.1} parent=1 // pred_check_branch
      %44 = sbr.rel (0) target = $region25
    $region24: #{qnetwork_forward.1} parent=1 // pred_region
      _
    $region25: #{qnetwork_forward.1} parent=1 // pred_fallthru
      _
    // Predicated region
    $region26: #{qnetwork_forward.1} parent=1 // pred_check
      _
    $region27: #{qnetwork_forward.1} parent=1 // pred_check_branch
      %46 = sbr.rel (0) target = $region29
    $region28: #{qnetwork_forward.1} parent=1 // pred_region
      %48 = vsyncadd [#allocation6], 0
      %s50 = sshll.u32 %s6, 4
      %s51 = int_to_ptr.hbm [resolvable:$true] %s50
      %s52 = sshll.u32 [#allocation7], 4
      %s53 = int_to_ptr.vmem [resolvable:$true] %s52
      %55 = dma.hbm_to_vmem [thread:$0]  %s51, 16, %s53, [#allocation6]
    $region29: #{qnetwork_forward.1} parent=1 // pred_fallthru
      _
    // Predicated region
    $region30: #{qnetwork_forward.1} parent=1 // pred_check
      _
    $region31: #{qnetwork_forward.1} parent=1 // pred_check_branch
      %57 = sbr.rel (0) target = $region33
    $region32: #{qnetwork_forward.1} parent=1 // pred_region
      %59 = dma.done [#allocation3], 32
    $region33: #{qnetwork_forward.1} parent=1 // pred_fallthru
      _
    // Predicated region
    $region34: #{qnetwork_forward.1} parent=1 // pred_check
      _
    $region35: #{qnetwork_forward.1} parent=1 // pred_check_branch
      %61 = sbr.rel (0) target = $region37
    $region36: #{qnetwork_forward.1} parent=1 // pred_region
      %63 = dma.done [#allocation6], 16
    $region37: #{qnetwork_forward.1} parent=1 // pred_fallthru
      _
    // Predicated region
    $region38: #{qnetwork_forward.1} parent=1 // pred_check
      _
    $region39: #{qnetwork_forward.1} parent=1 // pred_check_branch
      %65 = sbr.rel (0) target = $region41
    $region40: #{qnetwork_forward.1} parent=1 // pred_region
      %67 = dma.done [#allocation6], 16
    $region41: #{qnetwork_forward.1} parent=1 // pred_fallthru
      _
    %v68 = vld [vmem:[#allocation2] sm:$0x3]
    %v69 = vld [vmem:[%s2] sm:$0x1]
    %v70 = vld [vmem:[%s1] sm:$0x1]
    %72 = vset.pattern.permute.xlu0 0
    %73 = vperm.xlu0 %72, %v68
    %v74 = vpop.permute.xlu0 %73
    %v76 = vperm.slane %v70, 0
    %v77 = vmul.f32 %v74, %v76
    %v79 = vperm.slane %v69, 0
    %v81 = vadd.f32 %v79, %v77
    %v82 = vld [vmem:[%s1 + $0x1] sm:$0x1]
    %83 = vset.pattern.permute.xlu0 1
    %84 = vperm.xlu0 %83, %v68
    %v85 = vpop.permute.xlu0 %84
    %v87 = vperm.slane %v82, 0
    %v88 = vmul.f32 %v85, %v87
    %v89 = vadd.f32 %v81, %v88
    %v90 = vld [vmem:[%s1 + $0x2] sm:$0x1]
    %91 = vset.pattern.permute.xlu0 2
    %92 = vperm.xlu0 %91, %v68
    %v93 = vpop.permute.xlu0 %92
    %v95 = vperm.slane %v90, 0
    %v96 = vmul.f32 %v93, %v95
    %v97 = vadd.f32 %v89, %v96
    %v98 = vld [vmem:[%s1 + $0x3] sm:$0x1]
    %99 = vset.pattern.permute.xlu0 3
    %100 = vperm.xlu0 %99, %v68
    %v101 = vpop.permute.xlu0 %100
    %v103 = vperm.slane %v98, 0
    %v104 = vmul.f32 %v101, %v103
    %v105 = vadd.f32 %v97, %v104
    %v106 = vmax.f32 %v105, 0.0
    %v107 = vld [vmem:[%s3] sm:$0xff]
    %v108 = vld [vmem:[%s3 + $0x8] sm:$0xff]
    %v109 = vld [vmem:[%s3 + $0x10] sm:$0xff]
    %v110 = vld [vmem:[%s3 + $0x18] sm:$0xff]
    %v111 = vld [vmem:[%s3 + $0x20] sm:$0xff]
    %v112 = vld [vmem:[%s3 + $0x28] sm:$0xff]
    %v113 = vld [vmem:[%s3 + $0x30] sm:$0xff]
    %v114 = vld [vmem:[%s3 + $0x38] sm:$0xff]
    %v115 = vld [vmem:[%s3 + $0x40] sm:$0xff]
    %v116 = vld [vmem:[%s3 + $0x48] sm:$0xff]
    %v117 = vld [vmem:[%s3 + $0x50] sm:$0xff]
    %v118 = vld [vmem:[%s3 + $0x58] sm:$0xff]
    %v119 = vld [vmem:[%s3 + $0x60] sm:$0xff]
    %v120 = vld [vmem:[%s3 + $0x68] sm:$0xff]
    %v121 = vld [vmem:[%s3 + $0x70] sm:$0xff]
    %v122 = vld [vmem:[%s3 + $0x78] sm:$0xff]
    %v123 = vld [vmem:[#allocation5] sm:$0x1]
    %v125 = vperm.slane %v123, 0
    %127 = vmatpush.msra.mxu0 %v122
    %128 = vmatpush.msra.mxu0 %v121
    %129 = vmatpush.msra.mxu0 %v120
    %130 = vmatpush.msra.mxu0 %v119
    %131 = vmatpush.msra.mxu0 %v118
    %132 = vmatpush.msra.mxu0 %v117
    %133 = vmatpush.msra.mxu0 %v116
    %134 = vmatpush.msra.mxu0 %v115
    %135 = vmatpush.msra.mxu0 %v114
    %136 = vmatpush.msra.mxu0 %v113
    %137 = vmatpush.msra.mxu0 %v112
    %138 = vmatpush.msra.mxu0 %v111
    %139 = vmatpush.msra.mxu0 %v110
    %140 = vmatpush.msra.mxu0 %v109
    %141 = vmatpush.msra.mxu0 %v108
    %142 = vmatpush.msra.mxu0 %v107
    %143 = vmatmul.f32.gmra.mxu0 %v106
    %v144 = vpop.f32.mrf.mxu0
    %v145 = vadd.f32 %v125, %v144
    %146 = vdwg.mxu0
    %v147 = vmax.f32 %v145, 0.0
    %v148 = vld [vmem:[%s5] sm:$0xff]
    %v149 = vld [vmem:[%s5 + $0x8] sm:$0xff]
    %v150 = vld [vmem:[%s5 + $0x10] sm:$0xff]
    %v151 = vld [vmem:[%s5 + $0x18] sm:$0xff]
    %v152 = vld [vmem:[%s5 + $0x20] sm:$0xff]
    %v153 = vld [vmem:[%s5 + $0x28] sm:$0xff]
    %v154 = vld [vmem:[%s5 + $0x30] sm:$0xff]
    %v155 = vld [vmem:[%s5 + $0x38] sm:$0xff]
    %v156 = vld [vmem:[%s5 + $0x40] sm:$0xff]
    %v157 = vld [vmem:[%s5 + $0x48] sm:$0xff]
    %v158 = vld [vmem:[%s5 + $0x50] sm:$0xff]
    %v159 = vld [vmem:[%s5 + $0x58] sm:$0xff]
    %v160 = vld [vmem:[%s5 + $0x60] sm:$0xff]
    %v161 = vld [vmem:[%s5 + $0x68] sm:$0xff]
    %v162 = vld [vmem:[%s5 + $0x70] sm:$0xff]
    %v163 = vld [vmem:[%s5 + $0x78] sm:$0xff]
    %v164 = vld [vmem:[#allocation7] sm:$0x1]
    %v166 = vperm.slane %v164, 0
    %168 = vmatpush.msra.mxu0 %v163
    %169 = vmatpush.msra.mxu0 %v162
    %170 = vmatpush.msra.mxu0 %v161
    %171 = vmatpush.msra.mxu0 %v160
    %172 = vmatpush.msra.mxu0 %v159
    %173 = vmatpush.msra.mxu0 %v158
    %174 = vmatpush.msra.mxu0 %v157
    %175 = vmatpush.msra.mxu0 %v156
    %176 = vmatpush.msra.mxu0 %v155
    %177 = vmatpush.msra.mxu0 %v154
    %178 = vmatpush.msra.mxu0 %v153
    %179 = vmatpush.msra.mxu0 %v152
    %180 = vmatpush.msra.mxu0 %v151
    %181 = vmatpush.msra.mxu0 %v150
    %182 = vmatpush.msra.mxu0 %v149
    %183 = vmatpush.msra.mxu0 %v148
    %184 = vmatmul.f32.gmra.mxu0 %v147
    %v185 = vpop.f32.mrf.mxu0
    %v186 = vadd.f32 %v166, %v185
    %187 = vdwg.mxu0
    %vm188 = vcmask 9216
    %189 = vst.msk [vmem:[#allocation8] sm:$0x3] %vm188, %v186
    // Predicated region
    $region42: #{qnetwork_forward.1} parent=1 // pred_check
      _
    $region43: #{qnetwork_forward.1} parent=1 // pred_check_branch
      %191 = sbr.rel (0) target = $region45
    $region44: #{qnetwork_forward.1} parent=1 // pred_region
      %193 = vsyncadd [#allocation4], 0
      %s195 = sshll.u32 [#allocation8], 4
      %s196 = int_to_ptr.vmem [resolvable:$true] %s195
      %s197 = sshll.u32 %s7, 4
      %s198 = int_to_ptr.hbm [resolvable:$true] %s197
      %200 = dma.vmem_to_hbm [thread:$0]  %s196, 32, %s198, [#allocation4]
    $region45: #{qnetwork_forward.1} parent=1 // pred_fallthru
      _
    // Predicated region
    $region46: #{qnetwork_forward.1} parent=1 // pred_check
      _
    $region47: #{qnetwork_forward.1} parent=1 // pred_check_branch
      %202 = sbr.rel (0) target = $region49
    $region48: #{qnetwork_forward.1} parent=1 // pred_region
      %204 = dma.done [#allocation4], 32
    $region49: #{qnetwork_forward.1} parent=1 // pred_fallthru
      _
    %205 = vsyncpa [#allocation3], 1
    %206 = vsyncpa [#allocation6], 1
    %207 = vsyncpa [#allocation4], 1

</llo_original>
